<compile_context>
chip_gen: v6e
topology: v6e:2x2x1
jax: 0.10.0
libtpu: 0.0.40
codegen_flags: <defaults>
</compile_context>

<pallas_src>
import functools

import jax
import jax.numpy as jnp
from jax.experimental import pallas as pl
from jax.experimental.pallas import tpu as pltpu


def _const_spec(block_shape, index_map):
    """BlockSpec for a grid-invariant operand: request single buffering.

    Falls back to a plain BlockSpec if this jax version does not accept the
    pipeline_mode keyword.
    """
    try:
        return pl.BlockSpec(block_shape, index_map, pipeline_mode=pl.Buffered(1))
    except TypeError:
        return pl.BlockSpec(block_shape, index_map)


def _stats_kernel(x_ref, w1_ref, sum_ref, sumsq_ref):
    """Pass 1: accumulate per-feature sum / sum-of-squares of z = x @ W1.

    b1 is omitted: with gamma=1/beta=0 BatchNorm removes any constant bias, and
    omitting it makes zero-padded rows contribute exactly 0 to both sums.
    Grid = (shard, row_block); the output block index depends only on `shard`,
    so each shard owns a resident (1, H) accumulator pair.
    """
    @pl.when(pl.program_id(1) == 0)
    def _():
        sum_ref[...] = jnp.zeros_like(sum_ref)
        sumsq_ref[...] = jnp.zeros_like(sumsq_ref)

    z = jnp.dot(x_ref[...], w1_ref[...], preferred_element_type=jnp.float32)
    sum_ref[...] += jnp.sum(z, axis=0, keepdims=True)
    sumsq_ref[...] += jnp.sum(z * z, axis=0, keepdims=True)


def _heads_kernel(x_ref, w1_ref, mean_ref, wh_ref, bh_ref, out_ref,
                  *, n_gaussians):
    """Pass 2: BN shift + ReLU (scale pre-folded into wh), fused head matmul,
    head nonlinearities, lane-dense slab store."""
    g = n_gaussians

    z = jnp.dot(x_ref[...], w1_ref[...], preferred_element_type=jnp.float32)
    # rstd is folded into wh_ref in the wrapper (rstd > 0 commutes with ReLU).
    hn = jnp.maximum(z - mean_ref[...], 0.0)

    # One MXU pass produces [pi_lin | sigma_lin | mu_lin | 0-pad] lane-dense.
    lin = jnp.dot(hn, wh_ref[...], preferred_element_type=jnp.float32)
    lin = lin + bh_ref[...]                                           # (TN, P)

    col = jax.lax.broadcasted_iota(jnp.int32, lin.shape, 1)
    pi_mask = col < g
    sig_mask = jnp.logical_and(col >= g, col < 2 * g)

    # Single shared EUP exp: pi lanes get the clamped softmax argument (bounded
    # in [1e-8, 1], so no max-subtraction needed), all other lanes get the
    # ELU argument min(lin, 0).  pi and sigma lanes are disjoint.
    exp_arg = jnp.where(pi_mask, jnp.clip(lin, 1e-8, 1.0), jnp.minimum(lin, 0.0))
    exp_val = jnp.exp(exp_arg)

    # pi head: softmax over the G pi lanes only.
    e = jnp.where(pi_mask, exp_val, 0.0)
    denom = jnp.sum(e, axis=-1, keepdims=True)          # only pi lanes nonzero
    pi = e * pl.reciprocal(denom, approx=True)          # EUP vrcp (idle slot)

    # sigma head: ELU + 1.3 (non-sigma lanes discarded by the final select).
    sig = jnp.where(lin > 0.0, lin, exp_val - 1.0) + 1.3

    # mu head is the raw linear output; padding lanes are sliced off outside.
    out = jnp.where(pi_mask, pi, jnp.where(sig_mask, sig, lin))
    out_ref[...] = out.astype(out_ref.dtype)


def deep_dock_mdn_forward(x, params, *, block_rows=1024,
                          matmul_dtype=jnp.bfloat16,
                          out_dtype=jnp.float32,
                          vmem_limit_bytes=None):
    """x: (N, emb_size).  Returns (pi, sigma, mu), each (N, n_gaussians) float32."""
    n, e = x.shape
    h = params["w1"].shape[1]
    g = params["wpi"].shape[1]

    # ---- fold Linear(H,1) + three (1,G) heads into one (H, 3G) matmul -------
    w_cat = jnp.concatenate([params["wpi"], params["wsig"], params["wmu"]], axis=1)
    b_cat = jnp.concatenate([params["bpi"], params["bsig"], params["bmu"]], axis=1)
    w_heads = params["w2"] @ w_cat                  # (H, 3G)
    b_heads = params["b2"] * w_cat + b_cat          # (1, 3G)
    p_lanes = max(128, pl.cdiv(3 * g, 128) * 128)   # lane-dense padded width
    w_heads = jnp.pad(w_heads, ((0, 0), (0, p_lanes - 3 * g))).astype(jnp.float32)
    b_heads = jnp.pad(b_heads, ((0, 0), (0, p_lanes - 3 * g))).astype(jnp.float32)

    # ---- batch tiling (pad N with zero rows; they add exactly 0 to BN sums) --
    bf16_in = jnp.dtype(matmul_dtype) == jnp.dtype(jnp.bfloat16)
    pack = 16 if bf16_in else 8                     # sublane packing
    tn = block_rows if n >= block_rows else pl.cdiv(n, pack) * pack
    n_pad = pl.cdiv(n, 2 * tn) * (2 * tn)           # 2-way split for pass-1 shards
    x_p = jnp.pad(x, ((0, n_pad - n), (0, 0))).astype(matmul_dtype)
    w1 = params["w1"].astype(matmul_dtype)
    n_blocks = n_pad // tn
    bpc = n_blocks // 2                             # row blocks per pass-1 shard

    compiler_extra = {}
    if vmem_limit_bytes is not None:
        compiler_extra["vmem_limit_bytes"] = vmem_limit_bytes

    # ---- pass 1: full-batch BN statistics, 2-way sharded over the batch -----
    psum, psumsq = pl.pallas_call(
        _stats_kernel,
        out_shape=(jax.ShapeDtypeStruct((2, 1, h), jnp.float32),
                   jax.ShapeDtypeStruct((2, 1, h), jnp.float32)),
        grid=(2, bpc),
        in_specs=[pl.BlockSpec((tn, e), lambda c, i: (c * bpc + i, 0)),
                  _const_spec((e, h), lambda c, i: (0, 0))],
        out_specs=(pl.BlockSpec((None, 1, h), lambda c, i: (c, 0, 0)),
                   pl.BlockSpec((None, 1, h), lambda c, i: (c, 0, 0))),
        compiler_params=pltpu.CompilerParams(
            dimension_semantics=("parallel", "arbitrary"), **compiler_extra),
    )(x_p, w1)

    # Tiny finalize in plain JAX.  Biased variance + eps = 1e-5 matches
    # nn.BatchNorm1d training mode; b1 cancels under BN so it never appears.
    h_sum = jnp.sum(psum, axis=0)                   # (1, H)
    h_sumsq = jnp.sum(psumsq, axis=0)               # (1, H)
    inv_n = 1.0 / n
    mean = h_sum * inv_n
    var = jnp.maximum(h_sumsq * inv_n - mean * mean, 0.0)
    rstd = jax.lax.rsqrt(var + 1e-5)

    # Fold the BN scale into the head weights: rstd > 0, so
    # relu((z-mean)*rstd) @ W == relu(z-mean) @ (rstd[:,None] * W).
    w_heads_s = w_heads * jnp.transpose(rstd)       # (H,1) * (H,P) -> (H,P)

    # ---- pass 2: normalize + fused heads, lane-dense (N_pad, 128) output ----
    out = pl.pallas_call(
        functools.partial(_heads_kernel, n_gaussians=g),
        out_shape=jax.ShapeDtypeStruct((n_pad, p_lanes), out_dtype),
        grid=(n_blocks,),
        in_specs=[pl.BlockSpec((tn, e), lambda i: (i, 0)),
                  _const_spec((e, h), lambda i: (0, 0)),
                  _const_spec((1, h), lambda i: (0, 0)),
                  _const_spec((h, p_lanes), lambda i: (0, 0)),
                  _const_spec((1, p_lanes), lambda i: (0, 0))],
        out_specs=pl.BlockSpec((tn, p_lanes), lambda i: (i, 0)),
        compiler_params=pltpu.CompilerParams(
            dimension_semantics=("parallel",), **compiler_extra),
    )(x_p, w1, mean, w_heads_s, b_heads)

    out = out[:n, :3 * g].astype(jnp.float32)
    pi = out[:, 0:g]
    sigma = out[:, g:2 * g]
    mu = out[:, 2 * g:3 * g]
    return pi, sigma, mu


def make_params(key, emb_size, n_gaussians=20):
    """Deterministic synthetic parameters (weights stored pre-transposed)."""
    h = emb_size // 2
    k = jax.random.split(key, 8)
    params = {
        # mdn_layer Linear(E, H): weight stored as (E, H) for x @ W
        "w1": (jax.random.normal(k[0], (emb_size, h), jnp.float32) * 0.1),
        "b1": (jax.random.normal(k[1], (1, h), jnp.float32) * 0.1),
        # Linear(H, 1)
        "w2": (jax.random.normal(k[2], (h, 1), jnp.float32) * 0.1),
        "b2": (jax.random.normal(k[3], (1, 1), jnp.float32) * 0.1),
        # pi: weight = const 0.01 (reset_params)
        "wpi": jnp.full((1, n_gaussians), 0.01, jnp.float32),
        "bpi": (jax.random.normal(k[4], (1, n_gaussians), jnp.float32) * 0.1),
        # sigma: weight ~ U(-0.005, 0.005)
        "wsig": jax.random.uniform(k[5], (1, n_gaussians), jnp.float32,
                                   minval=-0.005, maxval=0.005),
        "bsig": (jax.random.normal(k[6], (1, n_gaussians), jnp.float32) * 0.1),
        # mu: weight ~ N(0, 0.01)
        "wmu": jax.random.normal(k[7], (1, n_gaussians), jnp.float32) * 0.01,
        "bmu": jnp.zeros((1, n_gaussians), jnp.float32),
    }
    return params


def reference_forward(x, p):
    """Pure-JAX reference matching the PyTorch module (includes b1)."""
    h = x @ p["w1"] + p["b1"]
    mean = jnp.mean(h, axis=0, keepdims=True)
    var = jnp.mean((h - mean) ** 2, axis=0, keepdims=True)
    h = (h - mean) / jnp.sqrt(var + 1e-5)
    h = jnp.maximum(h, 0.0)
    d = h @ p["w2"] + p["b2"]
    pi = jax.nn.softmax(jnp.clip(d * p["wpi"] + p["bpi"], 1e-8, 1.0), axis=-1)
    s = d * p["wsig"] + p["bsig"]
    sigma = jnp.where(s > 0, s, jnp.exp(s) - 1.0) + 1.3
    mu = d * p["wmu"] + p["bmu"]
    return pi, sigma, mu


if __name__ == "__main__":
    # Small demo shapes; N deliberately not a multiple of 16 to exercise the
    # zero-padding / two-shard stats path of the tiled two-pass BatchNorm.
    N, EMB, G = 12, 32, 20
    key = jax.random.PRNGKey(0)
    kx, kp = jax.random.split(key)
    x = jax.random.normal(kx, (N, EMB), jnp.float32)
    params = make_params(kp, EMB, G)
    pi_r, sigma_r, mu_r = reference_forward(x, params)

    # f32 matmul-input path: tight check against the pure-JAX reference
    # (tolerances account for the EUP approximate reciprocal and the folded
    # head-matmul / rstd-folding summation-order changes).
    pi, sigma, mu = jax.block_until_ready(
        deep_dock_mdn_forward(x, params, matmul_dtype=jnp.float32))
    assert pi.shape == (N, G) and sigma.shape == (N, G) and mu.shape == (N, G)
    assert jnp.allclose(pi, pi_r, atol=1e-3, rtol=1e-3)
    assert jnp.allclose(sigma, sigma_r, atol=1e-4, rtol=1e-4)
    assert jnp.allclose(mu, mu_r, atol=1e-4, rtol=1e-4)

    # Default path (bf16 matmul inputs, f32 accumulation / elementwise math):
    # looser tolerances for the bf16 activation / BN-statistics rounding.
    pi_b, sigma_b, mu_b = jax.block_until_ready(
        deep_dock_mdn_forward(x, params))
    assert pi_b.shape == (N, G) and sigma_b.shape == (N, G) and mu_b.shape == (N, G)
    assert jnp.allclose(pi_b, pi_r, atol=5e-3, rtol=5e-2)
    assert jnp.allclose(sigma_b, sigma_r, atol=5e-3, rtol=5e-2)
    assert jnp.allclose(mu_b, mu_r, atol=5e-3, rtol=5e-2)

    print("KERNEL_OK")
</pallas_src>

<mosaic_0001>
module attributes {stable_mosaic.version = 11 : i64} {
  func.func @_stats_kernel(%arg0: i32, %arg1: i32, %arg2: memref<16x32xf32, #tpu.memory_space<vmem>>, %arg3: memref<32x16xf32, #tpu.memory_space<vmem>>, %arg4: memref<1x1x16xf32, #tpu.memory_space<vmem>>, %arg5: memref<1x1x16xf32, #tpu.memory_space<vmem>>) attributes {dimension_semantics = [#tpu.dimension_semantics<parallel>, #tpu.dimension_semantics<arbitrary>], iteration_bounds = array<i64: 2, 1>, scalar_prefetch = 0 : i64, scratch_operands = 0 : i64, tpu.core_type = #tpu.core_type<tc>, window_params = [{transform_indices = @transform_0, window_bounds = array<i64: 16, 32>}, {pipeline_mode = #tpu.pipeline_mode<synchronous>, transform_indices = @transform_1, window_bounds = array<i64: 32, 16>}, {transform_indices = @transform_2, window_bounds = array<i64: 1, 1, 16>}, {transform_indices = @transform_3, window_bounds = array<i64: 1, 1, 16>}]} {
    %c0_i32 = arith.constant 0 : i32
    %0 = arith.cmpi eq, %arg1, %c0_i32 : i32
    %1 = arith.extui %0 : i1 to i32
    %c0_i32_0 = arith.constant 0 : i32
    %2 = arith.cmpi ne, %1, %c0_i32_0 : i32
    scf.if %2 {
      %cst_18 = arith.constant 0.000000e+00 : f32
      %23 = vector.broadcast %cst_18 : f32 to vector<1x16xf32>
      %c0_19 = arith.constant 0 : index
      %c0_20 = arith.constant 0 : index
      %c0_21 = arith.constant 0 : index
      %24 = vector.load %arg4[%c0_19, %c0_20, %c0_21] : memref<1x1x16xf32, #tpu.memory_space<vmem>>, vector<1x1x16xf32>
      %25 = vector.shape_cast %24 : vector<1x1x16xf32> to vector<1x16xf32>
      %26 = vector.shape_cast %23 : vector<1x16xf32> to vector<1x1x16xf32>
      tpu.vector_store %arg4[%c0_19, %c0_20, %c0_21], %26 {strides = array<i32>} : memref<1x1x16xf32, #tpu.memory_space<vmem>>, vector<1x1x16xf32>,
      %cst_22 = arith.constant 0.000000e+00 : f32
      %27 = vector.broadcast %cst_22 : f32 to vector<1x16xf32>
      %c0_23 = arith.constant 0 : index
      %c0_24 = arith.constant 0 : index
      %c0_25 = arith.constant 0 : index
      %28 = vector.load %arg5[%c0_23, %c0_24, %c0_25] : memref<1x1x16xf32, #tpu.memory_space<vmem>>, vector<1x1x16xf32>
      %29 = vector.shape_cast %28 : vector<1x1x16xf32> to vector<1x16xf32>
      %30 = vector.shape_cast %27 : vector<1x16xf32> to vector<1x1x16xf32>
      tpu.vector_store %arg5[%c0_23, %c0_24, %c0_25], %30 {strides = array<i32>} : memref<1x1x16xf32, #tpu.memory_space<vmem>>, vector<1x1x16xf32>,
    } else {
    }
    %c0 = arith.constant 0 : index
    %c0_1 = arith.constant 0 : index
    %3 = vector.load %arg2[%c0, %c0_1] : memref<16x32xf32, #tpu.memory_space<vmem>>, vector<16x32xf32>
    %c0_2 = arith.constant 0 : index
    %c0_3 = arith.constant 0 : index
    %4 = vector.load %arg3[%c0_2, %c0_3] : memref<32x16xf32, #tpu.memory_space<vmem>>, vector<32x16xf32>
    %cst = arith.constant dense<0.000000e+00> : vector<16x16xf32>
    %5 = tpu.matmul %3, %4, %cst {dimension_numbers = #tpu.dot_dimension_numbers<[1], [0], [0], [1], [0, 0, 1, 1], [], []>} : vector<16x32xf32>, vector<32x16xf32>, vector<16x16xf32> -> vector<16x16xf32>
    %c0_4 = arith.constant 0 : index
    %c0_5 = arith.constant 0 : index
    %c0_6 = arith.constant 0 : index
    %6 = vector.load %arg4[%c0_4, %c0_5, %c0_6] : memref<1x1x16xf32, #tpu.memory_space<vmem>>, vector<1x1x16xf32>
    %7 = vector.shape_cast %6 : vector<1x1x16xf32> to vector<1x16xf32>
    %cst_7 = arith.constant dense<0.000000e+00> : vector<16xf32>
    %8 = vector.multi_reduction <add>, %5, %cst_7 [0] : vector<16x16xf32> to vector<16xf32>
    %9 = vector.shape_cast %8 : vector<16xf32> to vector<1x16xf32>
    %10 = arith.addf %7, %9 : vector<1x16xf32>
    %c0_8 = arith.constant 0 : index
    %c0_9 = arith.constant 0 : index
    %c0_10 = arith.constant 0 : index
    %11 = vector.load %arg4[%c0_8, %c0_9, %c0_10] : memref<1x1x16xf32, #tpu.memory_space<vmem>>, vector<1x1x16xf32>
    %12 = vector.shape_cast %11 : vector<1x1x16xf32> to vector<1x16xf32>
    %13 = vector.shape_cast %10 : vector<1x16xf32> to vector<1x1x16xf32>
    tpu.vector_store %arg4[%c0_8, %c0_9, %c0_10], %13 {strides = array<i32>} : memref<1x1x16xf32, #tpu.memory_space<vmem>>, vector<1x1x16xf32>,
    %c0_11 = arith.constant 0 : index
    %c0_12 = arith.constant 0 : index
    %c0_13 = arith.constant 0 : index
    %14 = vector.load %arg5[%c0_11, %c0_12, %c0_13] : memref<1x1x16xf32, #tpu.memory_space<vmem>>, vector<1x1x16xf32>
    %15 = vector.shape_cast %14 : vector<1x1x16xf32> to vector<1x16xf32>
    %16 = arith.mulf %5, %5 : vector<16x16xf32>
    %cst_14 = arith.constant dense<0.000000e+00> : vector<16xf32>
    %17 = vector.multi_reduction <add>, %16, %cst_14 [0] : vector<16x16xf32> to vector<16xf32>
    %18 = vector.shape_cast %17 : vector<16xf32> to vector<1x16xf32>
    %19 = arith.addf %15, %18 : vector<1x16xf32>
    %c0_15 = arith.constant 0 : index
    %c0_16 = arith.constant 0 : index
    %c0_17 = arith.constant 0 : index
    %20 = vector.load %arg5[%c0_15, %c0_16, %c0_17] : memref<1x1x16xf32, #tpu.memory_space<vmem>>, vector<1x1x16xf32>
    %21 = vector.shape_cast %20 : vector<1x1x16xf32> to vector<1x16xf32>
    %22 = vector.shape_cast %19 : vector<1x16xf32> to vector<1x1x16xf32>
    tpu.vector_store %arg5[%c0_15, %c0_16, %c0_17], %22 {strides = array<i32>} : memref<1x1x16xf32, #tpu.memory_space<vmem>>, vector<1x1x16xf32>,
    return
  }
  func.func @transform_0(%arg0: i32, %arg1: i32) -> (i32, i32) {
    %c1_i32 = arith.constant 1 : i32
    %0 = arith.muli %arg0, %c1_i32 : i32
    %1 = arith.addi %0, %arg1 : i32
    %c0_i32 = arith.constant 0 : i32
    %c0_i32_0 = arith.constant 0 : i32
    return %1, %c0_i32 : i32, i32
  }
  func.func @transform_1(%arg0: i32, %arg1: i32) -> (i32, i32) {
    %c0_i32 = arith.constant 0 : i32
    %c0_i32_0 = arith.constant 0 : i32
    %c0_i32_1 = arith.constant 0 : i32
    return %c0_i32, %c0_i32_0 : i32, i32
  }
  func.func @transform_2(%arg0: i32, %arg1: i32) -> (i32, i32, i32) {
    %c0_i32 = arith.constant 0 : i32
    %c0_i32_0 = arith.constant 0 : i32
    %c0_i32_1 = arith.constant 0 : i32
    return %arg0, %c0_i32, %c0_i32_0 : i32, i32, i32
  }
  func.func @transform_3(%arg0: i32, %arg1: i32) -> (i32, i32, i32) {
    %c0_i32 = arith.constant 0 : i32
    %c0_i32_0 = arith.constant 0 : i32
    %c0_i32_1 = arith.constant 0 : i32
    return %arg0, %c0_i32, %c0_i32_0 : i32, i32, i32
  }
}

</mosaic_0001>

<llo_original>
// kernel: tpu_custom_call.1
$region0: #{tpu_custom_call.1}
  #allocation0 [shape = 'u32[]', space=smem, size = 0x4, offset = 0x4, fixed_abs, tag = 'smem constant byte address 0x4 - core index']
  #allocation1 [shape = 'u32[144,128]{1,0:T(1,128)}', space=vmem, size = 0x12000, scoped, tag = 'internal scratch']
  %s0 = inlined_call_operand.vmem [shape: f32[32,32], index: 0, kind: input, shape index: {}]
  %s1 = inlined_call_operand.vmem [shape: f32[32,16], index: 1, kind: input, shape index: {}]
  %s2 = inlined_call_operand.hbm [shape: f32[2,1,16], index: 2, kind: output, shape index: {0}]
  %s3 = inlined_call_operand.hbm [shape: f32[2,1,16], index: 3, kind: output, shape index: {1}]
  %4 = xla_tuple %s2, %s3
  %s5 = sld [smem:[#allocation0]]
  $region53: #{tpu_custom_call.1} parent=0
    _
  %s7 = ssub.s32 1, %s5
  %s8 = scalar_select 0, %s7, %s5
  $region1: #{tpu_custom_call.1} parent=0
    #allocation2 [shape = 'u8[1024]{0}', space=vmem, size = 0x400, scoped, tag = 'output window, operand 0']
    #allocation3 [shape = 's32[2]{0}', space=sflag, size = 0x8, scoped, tag = 'scoped memory for tpu_custom_call.1']
    #allocation4 [shape = 'u8[1024]{0}', space=vmem, size = 0x400, scoped, tag = 'output window, operand 1']
    #allocation5 [shape = 's32[2]{0}', space=sflag, size = 0x8, scoped, tag = 'scoped memory for tpu_custom_call.1']
    %9 = vsyncpa [#allocation3], 0
    %s10 = scalar_lea.sflag [#allocation3], 1
    %11 = vsyncpa %s10, 0
    %12 = vsyncpa [#allocation5], 0
    %s13 = scalar_lea.sflag [#allocation5], 1
    %14 = vsyncpa %s13, 0
    loop: start=0, step=1, limit=4
    $region2: #{tpu_custom_call.1} parent=1 // loop_pre_header
      _
    $region3: #{tpu_custom_call.1} parent=1 // loop_header
      %s16 = sphi 0, %s20
      %p17 = scmp.ge.s32.totalorder %s16, 4
      %s23 = sphi 0, %s35
      %s24 = sphi 0, %s31
      %s25 = sphi 0, %s23
      %s26 = sphi 0, %s24
      %s27 = sphi 0, %s25
      %s28 = sphi 0, %s26
      %s40 = sphi 0, %s42
      %s43 = sphi 0, %s40
      %s44 = sphi 0, %s43
      %s60 = sphi 0, %s44
      %s64 = sphi 0, %s64
      %s66 = sphi 0, %s64
      %s67 = sphi 0, %s66
      %s81 = sphi 0, %s67
      %s87 = sphi 0, %s89
      %s90 = sphi 0, %s87
      %s91 = sphi 0, %s90
      %s107 = sphi 0, %s91
      %s113 = sphi 0, %s115
      %s116 = sphi 0, %s113
      %s117 = sphi 0, %s116
      %s133 = sphi 0, %s117
    $region4: #{tpu_custom_call.1} parent=1 // loop_header_branch
      %19 = sbr.rel (%p17) target = $region8
    $region5: #{tpu_custom_call.1} parent=1 // loop_body
      %s21 = ssub.s32 %s16, 1
      %s22 = ssub.s32 %s16, 2
      %s29 = sadd.s32 1, %s24
      %p30 = scmp.ge.s32.totalorder %s29, 1
      %s31 = scalar_select %p30, 0, %s29
      %s32 = sadd.s32 1, %s23
      %s33 = scalar_select %p30, %s32, %s23
      %p34 = scmp.ge.s32.totalorder %s33, 2
      %s35 = scalar_select %p34, 0, %s33
      %s36 = sadd.s32 %s23, %s24
      %s37 = sadd.s32 %s35, %s31
      %s38 = ssub.s32 %s36, %s37
      %p39 = scmp.eq.s32.totalorder %s38, 0
      %s41 = sadd.s32 %s40, 1
      %s42 = scalar_select %p39, %s40, %s41
      %p45 = pneg %p39
      %p46 = scmp.eq.s32.totalorder %s16, 1
      %p47 = por %p45, %p46
      %p48 = scmp.ne.s32.totalorder %s40, %s43
      %p49 = scmp.eq.s32.totalorder %s16, 0
      %p50 = por %p48, %p49
      %p51 = scmp.ne.s32.totalorder %s40, %s43
      %p52 = scmp.eq.s32.totalorder %s21, 1
      %p53 = por %p51, %p52
      %p54 = scmp.ne.s32.totalorder %s43, %s44
      %p55 = scmp.eq.s32.totalorder %s21, 0
      %p56 = por %p54, %p55
      %p57 = scmp.ne.s32.totalorder %s43, %s44
      %p58 = scmp.eq.s32.totalorder %s22, 1
      %p59 = por %p57, %p58
      %p61 = scmp.ne.s32.totalorder %s44, %s60
      %p62 = scmp.eq.s32.totalorder %s22, 0
      %p63 = por %p61, %p62
      %s65 = sadd.s32 %s64, 1
      %p68 = scmp.eq.s32.totalorder %s16, 1
      %p69 = scmp.ne.s32.totalorder %s64, %s66
      %p70 = scmp.eq.s32.totalorder %s16, 0
      %p71 = por %p69, %p70
      %p72 = scmp.ne.s32.totalorder %s64, %s66
      %p73 = scmp.eq.s32.totalorder %s21, 1
      %p74 = por %p72, %p73
      %p75 = scmp.ne.s32.totalorder %s66, %s67
      %p76 = scmp.eq.s32.totalorder %s21, 0
      %p77 = por %p75, %p76
      %p78 = scmp.ne.s32.totalorder %s66, %s67
      %p79 = scmp.eq.s32.totalorder %s22, 1
      %p80 = por %p78, %p79
      %p82 = scmp.ne.s32.totalorder %s67, %s81
      %p83 = scmp.eq.s32.totalorder %s22, 0
      %p84 = por %p82, %p83
      %s85 = ssub.s32 %s23, %s35
      %p86 = scmp.eq.s32.totalorder %s85, 0
      %s88 = sadd.s32 %s87, 1
      %s89 = scalar_select %p86, %s87, %s88
      %p92 = pneg %p86
      %p93 = scmp.eq.s32.totalorder %s16, 1
      %p94 = por %p92, %p93
      %p95 = scmp.ne.s32.totalorder %s87, %s90
      %p96 = scmp.eq.s32.totalorder %s16, 0
      %p97 = por %p95, %p96
      %p98 = scmp.ne.s32.totalorder %s87, %s90
      %p99 = scmp.eq.s32.totalorder %s21, 1
      %p100 = por %p98, %p99
      %p101 = scmp.ne.s32.totalorder %s90, %s91
      %p102 = scmp.eq.s32.totalorder %s21, 0
      %p103 = por %p101, %p102
      %p104 = scmp.ne.s32.totalorder %s90, %s91
      %p105 = scmp.eq.s32.totalorder %s22, 1
      %p106 = por %p104, %p105
      %p108 = scmp.ne.s32.totalorder %s91, %s107
      %p109 = scmp.eq.s32.totalorder %s22, 0
      %p110 = por %p108, %p109
      %s111 = ssub.s32 %s23, %s35
      %p112 = scmp.eq.s32.totalorder %s111, 0
      %s114 = sadd.s32 %s113, 1
      %s115 = scalar_select %p112, %s113, %s114
      %p118 = pneg %p112
      %p119 = scmp.eq.s32.totalorder %s16, 1
      %p120 = por %p118, %p119
      %p121 = scmp.ne.s32.totalorder %s113, %s116
      %p122 = scmp.eq.s32.totalorder %s16, 0
      %p123 = por %p121, %p122
      %p124 = scmp.ne.s32.totalorder %s113, %s116
      %p125 = scmp.eq.s32.totalorder %s21, 1
      %p126 = por %p124, %p125
      %p127 = scmp.ne.s32.totalorder %s116, %s117
      %p128 = scmp.eq.s32.totalorder %s21, 0
      %p129 = por %p127, %p128
      %p130 = scmp.ne.s32.totalorder %s116, %s117
      %p131 = scmp.eq.s32.totalorder %s22, 1
      %p132 = por %p130, %p131
      %p134 = scmp.ne.s32.totalorder %s117, %s133
      %p135 = scmp.eq.s32.totalorder %s22, 0
      %p136 = por %p134, %p135
      %p137 = scmp.le.s32.totalorder 1, %s16
      %p138 = scmp.lt.s32.totalorder %s16, 3
      %p139 = pnand %p137, %p138
      %p140 = pneg %p139
      // Predicated region
      $region9: #{tpu_custom_call.1} parent=5 // pred_check
        _
      $region10: #{tpu_custom_call.1} parent=5 // pred_check_branch
        %142 = sbr.rel (%p139) target = $region12
      $region11: #{tpu_custom_call.1} parent=5 // pred_region
        %s143 = ssub.s32 %s16, 1
        // Predicated region
        $region13: #{tpu_custom_call.1} parent=11 // pred_check
          %p144 = pneg %p77
        $region14: #{tpu_custom_call.1} parent=11 // pred_check_branch
          %146 = sbr.rel (%p144) target = $region16
        $region15: #{tpu_custom_call.1} parent=11 // pred_region
          _
        $region16: #{tpu_custom_call.1} parent=11 // pred_fallthru
          _
      $region12: #{tpu_custom_call.1} parent=5 // pred_fallthru
        _
      %p147 = scmp.lt.s32.totalorder %s16, 2
      // Predicated region
      $region17: #{tpu_custom_call.1} parent=5 // pred_check
        %p148 = pneg %p147
      $region18: #{tpu_custom_call.1} parent=5 // pred_check_branch
        %150 = sbr.rel (%p148) target = $region20
      $region19: #{tpu_custom_call.1} parent=5 // pred_region
        // Predicated region
        $region21: #{tpu_custom_call.1} parent=19 // pred_check
          %p151 = pneg %p50
        $region22: #{tpu_custom_call.1} parent=19 // pred_check_branch
          %153 = sbr.rel (%p151) target = $region24
        $region23: #{tpu_custom_call.1} parent=19 // pred_region
          %s154 = sadd.s32 %s23, %s24
          %s155 = smul.u32 2, %s154
          %p156 = scmp.lt.s32.totalorder %s155, 3
          %s157 = scalar_select %p156, %s155, 3
          %s158 = smul.addr %s157, 8
          %s159 = scalar_lea.vmem %s0, %s158
          %s160 = sadd.s32 %s23, %s24
          %s161 = smul.u32 2, %s160
        $region24: #{tpu_custom_call.1} parent=19 // pred_fallthru
          _
      $region20: #{tpu_custom_call.1} parent=5 // pred_fallthru
        _
      %p162 = scmp.le.s32.totalorder 1, %s16
      %p163 = scmp.lt.s32.totalorder %s16, 3
      %p164 = pnand %p162, %p163
      %p165 = pneg %p164
      // Predicated region
      $region25: #{tpu_custom_call.1} parent=5 // pred_check
        _
      $region26: #{tpu_custom_call.1} parent=5 // pred_check_branch
        %167 = sbr.rel (%p164) target = $region28
      $region27: #{tpu_custom_call.1} parent=5 // pred_region
        %s168 = ssub.s32 %s16, 1
        %s169 = sadd.s32 %s25, %s26
        %s170 = smul.u32 2, %s169
        %p171 = scmp.lt.s32.totalorder %s170, 3
        %s172 = scalar_select %p171, %s170, 3
        %s173 = smul.addr %s172, 8
        %s174 = scalar_lea.vmem %s0, %s173
        %p175 = pneg %p56
        %p176 = pneg %p53
        %p177 = pneg %p77
        %p178 = pneg %p74
        %p179 = pneg %p103
        %p180 = pneg %p100
        %s181 = sand.u32 %s90, 1
        %s182 = scalar_lea.sflag [#allocation3], %s181
        %s183 = sand.u32 %s90, 1
        %s184 = scalar_lea.vmem [#allocation2], %s183
        %p185 = pneg %p129
        %p186 = pneg %p126
        %s187 = sand.u32 %s116, 1
        %s188 = scalar_lea.sflag [#allocation5], %s187
        %s189 = sand.u32 %s116, 1
        %s190 = scalar_lea.vmem [#allocation4], %s189
        %s191 = sadd.s32 %s25, %s26
        %s192 = smul.u32 2, %s191
        %p193 = scmp.lt.s32.totalorder %s192, 3
        %s194 = scalar_select %p193, %s192, 3
        %s195 = smul.addr %s194, 8
        %s196 = scalar_lea.vmem %s0, %s195
        %s197 = sadd.s32 %s25, %s26
        %s198 = smul.u32 2, %s197
        %p199 = scmp.eq.s32.totalorder %s26, 0
        // Predicated region
        $region29: #{tpu_custom_call.1} parent=27 // pred_check
          %p200 = pneg %p199
        $region30: #{tpu_custom_call.1} parent=27 // pred_check_branch
          %202 = sbr.rel (%p200) target = $region32
        $region31: #{tpu_custom_call.1} parent=27 // pred_region
          %vm203 = vcmask 122880
          %204 = vst.msk [vmem:[%s184] sm:$0x1] %vm203, 0.0
          %205 = vst.msk [vmem:[%s190] sm:$0x1] %vm203, 0.0
        $region32: #{tpu_custom_call.1} parent=27 // pred_fallthru
          _
        %v206 = vld [vmem:[%s196] sm:$0xff]
        %v207 = vld [vmem:[%s196 + $0x8] sm:$0xff]
        %v208 = vld [vmem:[%s1] sm:$0xff]
        %v209 = vld [vmem:[%s1 + $0x8] sm:$0xff]
        %v210 = vld [vmem:[%s1 + $0x10] sm:$0xff]
        %v211 = vld [vmem:[%s1 + $0x18] sm:$0xff]
        %vm212 = vcmask 261120
        %v214 = vsel %vm212, %v206, 0
        %v217 = vsel %vm212, %v207, 0
        %219 = vmatprep.subr.mxu0 0.0
        %220 = vmatpush1.msra.mxu0 0.0
        %221 = vmatprep.subr.mxu0 0.0
        %222 = vmatpush1.msra.mxu0 0.0
        %223 = vmatprep.subr.mxu0 0.0
        %224 = vmatpush1.msra.mxu0 0.0
        %225 = vmatprep.subr.mxu0 0.0
        %226 = vmatpush1.msra.mxu0 0.0
        %227 = vmatprep.subr.mxu0 0.0
        %228 = vmatpush1.msra.mxu0 0.0
        %229 = vmatprep.subr.mxu0 0.0
        %230 = vmatpush1.msra.mxu0 0.0
        %231 = vmatprep.subr.mxu0 0.0
        %232 = vmatpush1.msra.mxu0 0.0
        %233 = vmatprep.subr.mxu0 0.0
        %234 = vmatpush1.msra.mxu0 0.0
        %235 = vmatprep.subr.mxu0 0.0
        %236 = vmatpush1.msra.mxu0 0.0
        %237 = vmatprep.subr.mxu0 0.0
        %238 = vmatpush1.msra.mxu0 0.0
        %239 = vmatprep.subr.mxu0 0.0
        %240 = vmatpush1.msra.mxu0 0.0
        %241 = vmatprep.subr.mxu0 0.0
        %242 = vmatpush1.msra.mxu0 0.0
        %243 = vmatprep.subr.mxu0 0.0
        %244 = vmatpush1.msra.mxu0 %v211
        %245 = vmatprep.subr.mxu0 0.0
        %246 = vmatpush1.msra.mxu0 %v210
        %247 = vmatprep.subr.mxu0 0.0
        %248 = vmatpush1.msra.mxu0 %v209
        %249 = vmatprep.subr.mxu0 0.0
        %250 = vmatpush1.msra.mxu0 %v208
        %251 = vmatprep.subr.mxu0 0.0
        %252 = vmatpush2.msra.mxu0 0.0
        %253 = vmatprep.subr.mxu0 0.0
        %254 = vmatpush2.msra.mxu0 0.0
        %255 = vmatprep.subr.mxu0 0.0
        %256 = vmatpush2.msra.mxu0 0.0
        %257 = vmatprep.subr.mxu0 0.0
        %258 = vmatpush2.msra.mxu0 0.0
        %259 = vmatprep.subr.mxu0 0.0
        %260 = vmatpush2.msra.mxu0 0.0
        %261 = vmatprep.subr.mxu0 0.0
        %262 = vmatpush2.msra.mxu0 0.0
        %263 = vmatprep.subr.mxu0 0.0
        %264 = vmatpush2.msra.mxu0 0.0
        %265 = vmatprep.subr.mxu0 0.0
        %266 = vmatpush2.msra.mxu0 0.0
        %267 = vmatprep.subr.mxu0 0.0
        %268 = vmatpush2.msra.mxu0 0.0
        %269 = vmatprep.subr.mxu0 0.0
        %270 = vmatpush2.msra.mxu0 0.0
        %271 = vmatprep.subr.mxu0 0.0
        %272 = vmatpush2.msra.mxu0 0.0
        %273 = vmatprep.subr.mxu0 0.0
        %274 = vmatpush2.msra.mxu0 0.0
        %275 = vmatprep.subr.mxu0 0.0
        %276 = vmatpush2.msra.mxu0 0.0
        %277 = vmatprep.subr.mxu0 0.0
        %278 = vmatpush2.msra.mxu0 0.0
        %279 = vmatprep.subr.mxu0 0.0
        %280 = vmatpush2.msra.mxu0 0.0
        %281 = vmatprep.subr.mxu0 0.0
        %282 = vmatpush2.msra.mxu0 0.0
        %283 = vmatprep.mubr.f32.mxu0 0.0
        %284 = vmatmul.mubr.f32.gmra.mxu0 %v214
        %v285 = vpop.f32.mrf.mxu0
        %v286 = vadd.f32 0.0, %v285
        %v287 = vpop.f32.mrf.mxu0
        %288 = vmatprep.mubr.f32.mxu0 0.0
        %289 = vmatmul.mubr.f32.gmra.mxu0 %v217
        %v290 = vpop.f32.mrf.mxu0
        %v291 = vadd.f32 0.0, %v290
        %v292 = vpop.f32.mrf.mxu0
        %293 = vdwg.mxu0
        %v294 = vld [vmem:[%s184] sm:$0x1]
        %vm295 = vcmask 130048
        %v296 = vsel %vm295, %v286, 0.0
        %v297 = vsel %vm295, %v291, 0.0
        %v298 = vadd.f32 %v296, %v297
        %v299 = vrot.slane %v298, 4
        %v300 = vadd.f32 %v298, %v299
        %v301 = vrot.slane %v300, 2
        %v302 = vadd.f32 %v300, %v301
        %v303 = vrot.slane %v302, 1
        %v304 = vadd.f32 %v302, %v303
        %v305 = vadd.f32 %v294, %v304
        %vm306 = vcmask 122880
        %307 = vst.msk [vmem:[%s184] sm:$0x1] %vm306, %v305
        %v308 = vld [vmem:[%s190] sm:$0x1]
        %v309 = vmul.f32 %v286, %v286
        %v310 = vmul.f32 %v291, %v291
        %v311 = vsel %vm295, %v309, 0.0
        %v312 = vsel %vm295, %v310, 0.0
        %v313 = vadd.f32 %v311, %v312
        %v314 = vrot.slane %v313, 4
        %v315 = vadd.f32 %v313, %v314
        %v316 = vrot.slane %v315, 2
        %v317 = vadd.f32 %v315, %v316
        %v318 = vrot.slane %v317, 1
        %v319 = vadd.f32 %v317, %v318
        %v320 = vadd.f32 %v308, %v319
        %321 = vst.msk [vmem:[%s190] sm:$0x1] %vm306, %v320
        %s322 = sand.u32 %s90, 1
        %s323 = scalar_lea.sflag [#allocation3], %s322
        %s324 = sand.u32 %s90, 1
        %s325 = scalar_lea.vmem [#allocation2], %s324
        %s326 = sand.u32 %s116, 1
        %s327 = scalar_lea.sflag [#allocation5], %s326
        %s328 = sand.u32 %s116, 1
        %s329 = scalar_lea.vmem [#allocation4], %s328
        // Predicated region
        $region33: #{tpu_custom_call.1} parent=27 // pred_check
          %p330 = pneg %p100
        $region34: #{tpu_custom_call.1} parent=27 // pred_check_branch
          %332 = sbr.rel (%p330) target = $region36
        $region35: #{tpu_custom_call.1} parent=27 // pred_region
          %s334 = ssub.s32 16, 16
          %335 = vsyncadd %s323, %s334
          %s336 = smul.addr %s25, 16
          %s337 = scalar_lea.hbm %s2, %s336
          %s339 = sshll.u32 %s325, 4
          %s340 = int_to_ptr.vmem [resolvable:$true] %s339
          %342 = dma.vmem_to_hbm [thread:$0]  %s340, 16, %s337, %s323
        $region36: #{tpu_custom_call.1} parent=27 // pred_fallthru
          _
        // Predicated region
        $region37: #{tpu_custom_call.1} parent=27 // pred_check
          %p343 = pneg %p126
        $region38: #{tpu_custom_call.1} parent=27 // pred_check_branch
          %345 = sbr.rel (%p343) target = $region40
        $region39: #{tpu_custom_call.1} parent=27 // pred_region
          %s347 = ssub.s32 16, 16
          %348 = vsyncadd %s327, %s347
          %s349 = smul.addr %s25, 16
          %s350 = scalar_lea.hbm %s3, %s349
          %s352 = sshll.u32 %s329, 4
          %s353 = int_to_ptr.vmem [resolvable:$true] %s352
          %355 = dma.vmem_to_hbm [thread:$0]  %s353, 16, %s350, %s327
        $region40: #{tpu_custom_call.1} parent=27 // pred_fallthru
          _
      $region28: #{tpu_custom_call.1} parent=5 // pred_fallthru
        _
      %p356 = scmp.le.s32.totalorder 2, %s16
      // Predicated region
      $region41: #{tpu_custom_call.1} parent=5 // pred_check
        %p357 = pneg %p356
      $region42: #{tpu_custom_call.1} parent=5 // pred_check_branch
        %359 = sbr.rel (%p357) target = $region44
      $region43: #{tpu_custom_call.1} parent=5 // pred_region
        %s360 = ssub.s32 %s16, 2
        // Predicated region
        $region45: #{tpu_custom_call.1} parent=43 // pred_check
          %p361 = pneg %p106
        $region46: #{tpu_custom_call.1} parent=43 // pred_check_branch
          %363 = sbr.rel (%p361) target = $region48
        $region47: #{tpu_custom_call.1} parent=43 // pred_region
          %s364 = sand.u32 %s91, 1
          %s365 = scalar_lea.sflag [#allocation3], %s364
          %s366 = sand.u32 %s91, 1
          %s367 = scalar_lea.vmem [#allocation2], %s366
          %368 = dma.done %s365, 16
        $region48: #{tpu_custom_call.1} parent=43 // pred_fallthru
          _
        // Predicated region
        $region49: #{tpu_custom_call.1} parent=43 // pred_check
          %p369 = pneg %p132
        $region50: #{tpu_custom_call.1} parent=43 // pred_check_branch
          %371 = sbr.rel (%p369) target = $region52
        $region51: #{tpu_custom_call.1} parent=43 // pred_region
          %s372 = sand.u32 %s117, 1
          %s373 = scalar_lea.sflag [#allocation5], %s372
          %s374 = sand.u32 %s117, 1
          %s375 = scalar_lea.vmem [#allocation4], %s374
          %376 = dma.done %s373, 16
        $region52: #{tpu_custom_call.1} parent=43 // pred_fallthru
          _
      $region44: #{tpu_custom_call.1} parent=5 // pred_fallthru
        _
    $region6: #{tpu_custom_call.1} parent=1 // loop_footer
      %s20 = sadd.s32 1, %s16
    $region7: #{tpu_custom_call.1} parent=1 // loop_footer_branch
      %15 = sbr.rel target = $region3
    $region8: #{tpu_custom_call.1} parent=1 // loop_exit
      _
    %377 = vsyncpa [#allocation3], 1
    %s378 = scalar_lea.sflag [#allocation3], 1
    %379 = vsyncpa %s378, 1
    %380 = vsyncpa [#allocation5], 1
    %s381 = scalar_lea.sflag [#allocation5], 1
    %382 = vsyncpa %s381, 1

</llo_original>
